<compile_context>
chip_gen: v5e
topology: v5e:2x2
jax: 0.10.0
libtpu: 0.0.40
codegen_flags: <defaults>
</compile_context>

<pallas_src>
import jax
import jax.numpy as jnp
from jax.experimental import pallas as pl
from jax.experimental.pallas import tpu as pltpu

N_RES = 4          # rb1..rb4
NEG_SLOPE = 0.2    # LeakyReLU(0.2)


def _leaky_relu(x):
    return jnp.where(x > 0, x, NEG_SLOPE * x)


# ----------------------------- Pallas kernel -------------------------------

def forward_kernel(s_ref, a_ref,
                   w_pre_s_ref, wa_all_ref, b_all_ref,
                   w1x_ref, w2x_ref,
                   w_post_ref, b_post_ref,
                   out_ref):
    H = w_pre_s_ref.shape[1]
    mxu_dt = w_pre_s_ref.dtype          # bf16

    s = s_ref[...]                       # (bb, S) bf16
    a = a_ref[...]                       # (bb, A) bf16

    # One fused K=A matmul for ALL action projections; biases folded in. f32 out.
    a_proj = (jnp.dot(a, wa_all_ref[...], preferred_element_type=jnp.float32)
              + b_all_ref[...])          # (bb, 9*H)

    # pre_rb: LeakyReLU(Linear(cat[s, a]))
    x = (jnp.dot(s, w_pre_s_ref[...], preferred_element_type=jnp.float32)
         + a_proj[:, 0:H])
    x = _leaky_relu(x)                   # f32 activations

    # 4 residual blocks (static unroll)
    for i in range(N_RES):
        h = (jnp.dot(x.astype(mxu_dt), w1x_ref[i],
                     preferred_element_type=jnp.float32)
             + a_proj[:, (1 + 2 * i) * H:(2 + 2 * i) * H])
        h = _leaky_relu(h)
        h = (jnp.dot(h.astype(mxu_dt), w2x_ref[i],
                     preferred_element_type=jnp.float32)
             + a_proj[:, (2 + 2 * i) * H:(3 + 2 * i) * H])
        x = x + h                        # f32 residual add

    # post_rb: Linear(hidden -> state)
    out = (jnp.dot(x.astype(mxu_dt), w_post_ref[...],
                   preferred_element_type=jnp.float32)
           + b_post_ref[...])
    out_ref[...] = out.astype(out_ref.dtype)


# ------------------------------- wrapper ------------------------------------

def forward_model(s, a, params, *, block_b=None):
    B, S = s.shape
    _, A = a.shape
    H = params["w_pre_s"].shape[1]

    # TODO(synk): if S is ever not a multiple of 128, pad w_post / the output to
    # a lane-dense slab and slice in the wrapper (avoids masked partial stores).

    if block_b is None:
        # Fill the MXU M dimension (256 on v6e/v7x; pass block_b=128 on v5e).
        # Capping also yields grid >= 2 on large batches so v7x's second
        # TensorCore gets work and s/a DMAs pipeline against compute.
        block_b = B if B <= 256 else 256
    grid = (pl.cdiv(B, block_b),)

    bf16 = jnp.bfloat16
    s_b = s.astype(bf16)
    a_b = a.astype(bf16)
    w_pre_s = params["w_pre_s"].astype(bf16)
    wa_all = params["wa_all"].astype(bf16)
    b_all = params["b_all"].astype(jnp.float32)
    w1x = params["w1x"].astype(bf16)
    w2x = params["w2x"].astype(bf16)
    w_post = params["w_post"].astype(bf16)
    b_post = params["b_post"].astype(jnp.float32)

    def batch_spec(feat):
        return pl.BlockSpec((block_b, feat), lambda i: (i, 0))

    def full2(shape):                    # grid-invariant weight slab
        return pl.BlockSpec(shape, lambda i: (0, 0))

    def full3(shape):
        return pl.BlockSpec(shape, lambda i: (0, 0, 0))

    in_specs = [
        batch_spec(S),                        # s
        batch_spec(A),                        # a
        full2((S, H)),                        # pre_rb state half
        full2((A, 9 * H)), full2((1, 9 * H)),  # fused action proj + fused biases
        full3((N_RES, H, H)),                 # fc1 state halves (stacked)
        full3((N_RES, H, H)),                 # fc2 state halves (stacked)
        full2((H, S)), full2((1, S)),         # post_rb
    ]

    # Explicit VMEM budget (double-buffered by default): bf16 weights + f32
    # biases + in/out activation tiles, with a floor above the scoped defaults.
    weight_bytes = (S * H + A * 9 * H + 2 * N_RES * H * H + H * S) * 2 \
        + (9 * H + S) * 4
    act_bytes = block_b * (S + A) * 2 + block_b * S * 4
    vmem_limit = int(min(64 << 20,
                         max(16 << 20, 2 * (weight_bytes + act_bytes) + (2 << 20))))

    return pl.pallas_call(
        forward_kernel,
        out_shape=jax.ShapeDtypeStruct((B, S), jnp.float32),
        grid_spec=pltpu.PrefetchScalarGridSpec(
            num_scalar_prefetch=0,
            grid=grid,
            in_specs=in_specs,
            out_specs=batch_spec(S),
        ),
        compiler_params=pltpu.CompilerParams(
            dimension_semantics=("parallel",),
            vmem_limit_bytes=vmem_limit),
    )(s_b, a_b, w_pre_s, wa_all, b_all, w1x, w2x, w_post, b_post)


# -------------------------- deterministic params ----------------------------

def _init_normc(key, out_dim, in_dim):
    # init_normc_: normal(0,1), each output row normalized (PyTorch (out,in) layout)
    w = jax.random.normal(key, (out_dim, in_dim), dtype=jnp.float32)
    return w / jnp.sqrt(jnp.sum(w * w, axis=1, keepdims=True))


def make_params(key, n_actions, state_size, hidden_size):
    keys = jax.random.split(key, 2 + 2 * N_RES)
    H, S, A = hidden_size, state_size, n_actions

    # pre_rb: Linear(S + A -> H); split the concat into s / a column halves.
    w_pre = _init_normc(keys[0], H, S + A)
    w_pre_s = jnp.transpose(w_pre[:, :S])                 # (S, H)
    wa_cols = [jnp.transpose(w_pre[:, S:])]               # (A, H)
    b_cols = [jnp.zeros((1, H), jnp.float32)]             # constant_(0) init

    w1x, w2x = [], []
    for i in range(N_RES):
        w1 = _init_normc(keys[1 + 2 * i], H, H + A)
        w2 = _init_normc(keys[2 + 2 * i], H, H + A)
        w1x.append(jnp.transpose(w1[:, :H]))
        w2x.append(jnp.transpose(w2[:, :H]))
        wa_cols += [jnp.transpose(w1[:, H:]), jnp.transpose(w2[:, H:])]
        b_cols += [jnp.zeros((1, H), jnp.float32),
                   jnp.zeros((1, H), jnp.float32)]

    wp = _init_normc(keys[-1], S, H)

    bf16 = jnp.bfloat16
    return {
        "w_pre_s": w_pre_s.astype(bf16),                       # (S, H)
        "wa_all": jnp.concatenate(wa_cols, axis=1).astype(bf16),  # (A, 9*H)
        "b_all": jnp.concatenate(b_cols, axis=1),              # (1, 9*H) f32
        "w1x": jnp.stack(w1x).astype(bf16),                    # (N_RES, H, H)
        "w2x": jnp.stack(w2x).astype(bf16),                    # (N_RES, H, H)
        "w_post": jnp.transpose(wp).astype(bf16),              # (H, S)
        "b_post": jnp.zeros((1, S), jnp.float32),              # (1, S)
    }


# --------------------------- plain-JAX reference ----------------------------

def reference(s, a, params):
    # Same math as the kernel: bf16 operands into each matmul, f32 accumulation.
    bf16 = jnp.bfloat16
    f32 = jnp.float32
    H = params["w_pre_s"].shape[1]
    a_b = a.astype(bf16)
    a_proj = jnp.dot(a_b, params["wa_all"], preferred_element_type=f32) \
        + params["b_all"]
    x = jnp.dot(s.astype(bf16), params["w_pre_s"], preferred_element_type=f32) \
        + a_proj[:, 0:H]
    x = _leaky_relu(x)
    for i in range(N_RES):
        h = jnp.dot(x.astype(bf16), params["w1x"][i], preferred_element_type=f32) \
            + a_proj[:, (1 + 2 * i) * H:(2 + 2 * i) * H]
        h = _leaky_relu(h)
        h = jnp.dot(h.astype(bf16), params["w2x"][i], preferred_element_type=f32) \
            + a_proj[:, (2 + 2 * i) * H:(3 + 2 * i) * H]
        x = x + h
    return jnp.dot(x.astype(bf16), params["w_post"], preferred_element_type=f32) \
        + params["b_post"]


# ---------------------------------- main -------------------------------------

if __name__ == "__main__":
    # small shapes consistent with the module: (batch, state_size) and (batch, n_actions)
    batch = 16
    n_actions = 8
    state_size = 128
    hidden_size = 128

    root = jax.random.PRNGKey(0)
    k_params, k_s, k_a = jax.random.split(root, 3)

    params = make_params(k_params, n_actions, state_size, hidden_size)
    s = jax.random.normal(k_s, (batch, state_size), dtype=jnp.float32)
    a = jax.random.normal(k_a, (batch, n_actions), dtype=jnp.float32)

    out = forward_model(s, a, params)
    out = jax.block_until_ready(out)

    ref = reference(s, a, params)
    assert out.shape == (batch, state_size)
    assert jnp.allclose(out, ref, atol=1e-2, rtol=1e-2), "mismatch vs JAX reference"

    print("KERNEL_OK")
</pallas_src>

<mosaic_0001>
module attributes {stable_mosaic.version = 11 : i64} {
  func.func @forward_kernel(%arg0: i32, %arg1: memref<16x128xbf16, #tpu.memory_space<vmem>>, %arg2: memref<16x8xbf16, #tpu.memory_space<vmem>>, %arg3: memref<128x128xbf16, #tpu.memory_space<vmem>>, %arg4: memref<8x1152xbf16, #tpu.memory_space<vmem>>, %arg5: memref<1x1152xf32, #tpu.memory_space<vmem>>, %arg6: memref<4x128x128xbf16, #tpu.memory_space<vmem>>, %arg7: memref<4x128x128xbf16, #tpu.memory_space<vmem>>, %arg8: memref<128x128xbf16, #tpu.memory_space<vmem>>, %arg9: memref<1x128xf32, #tpu.memory_space<vmem>>, %arg10: memref<16x128xf32, #tpu.memory_space<vmem>>) attributes {dimension_semantics = [#tpu.dimension_semantics<parallel>], iteration_bounds = array<i64: 1>, scalar_prefetch = 0 : i64, scratch_operands = 0 : i64, tpu.core_type = #tpu.core_type<tc>, window_params = [{transform_indices = @transform_0, window_bounds = array<i64: 16, 128>}, {transform_indices = @transform_1, window_bounds = array<i64: 16, 8>}, {pipeline_mode = #tpu.pipeline_mode<synchronous>, transform_indices = @transform_2, window_bounds = array<i64: 128, 128>}, {pipeline_mode = #tpu.pipeline_mode<synchronous>, transform_indices = @transform_3, window_bounds = array<i64: 8, 1152>}, {pipeline_mode = #tpu.pipeline_mode<synchronous>, transform_indices = @transform_4, window_bounds = array<i64: 1, 1152>}, {pipeline_mode = #tpu.pipeline_mode<synchronous>, transform_indices = @transform_5, window_bounds = array<i64: 4, 128, 128>}, {pipeline_mode = #tpu.pipeline_mode<synchronous>, transform_indices = @transform_6, window_bounds = array<i64: 4, 128, 128>}, {pipeline_mode = #tpu.pipeline_mode<synchronous>, transform_indices = @transform_7, window_bounds = array<i64: 128, 128>}, {pipeline_mode = #tpu.pipeline_mode<synchronous>, transform_indices = @transform_8, window_bounds = array<i64: 1, 128>}, {transform_indices = @transform_9, window_bounds = array<i64: 16, 128>}]} {
    %c0 = arith.constant 0 : index
    %c0_0 = arith.constant 0 : index
    %0 = vector.load %arg1[%c0, %c0_0] : memref<16x128xbf16, #tpu.memory_space<vmem>>, vector<16x128xbf16>
    %c0_1 = arith.constant 0 : index
    %c0_2 = arith.constant 0 : index
    %1 = vector.load %arg2[%c0_1, %c0_2] : memref<16x8xbf16, #tpu.memory_space<vmem>>, vector<16x8xbf16>
    %c0_3 = arith.constant 0 : index
    %c0_4 = arith.constant 0 : index
    %2 = vector.load %arg4[%c0_3, %c0_4] : memref<8x1152xbf16, #tpu.memory_space<vmem>>, vector<8x1152xbf16>
    %cst = arith.constant dense<0.000000e+00> : vector<16x1152xf32>
    %3 = tpu.matmul %1, %2, %cst {dimension_numbers = #tpu.dot_dimension_numbers<[1], [0], [0], [1], [0, 0, 1, 1], [], []>} : vector<16x8xbf16>, vector<8x1152xbf16>, vector<16x1152xf32> -> vector<16x1152xf32>
    %c0_5 = arith.constant 0 : index
    %c0_6 = arith.constant 0 : index
    %4 = vector.load %arg5[%c0_5, %c0_6] : memref<1x1152xf32, #tpu.memory_space<vmem>>, vector<1x1152xf32>
    %5 = vector.broadcast %4 : vector<1x1152xf32> to vector<16x1152xf32>
    %6 = arith.addf %3, %5 : vector<16x1152xf32>
    %c0_7 = arith.constant 0 : index
    %c0_8 = arith.constant 0 : index
    %7 = vector.load %arg3[%c0_7, %c0_8] : memref<128x128xbf16, #tpu.memory_space<vmem>>, vector<128x128xbf16>
    %cst_9 = arith.constant dense<0.000000e+00> : vector<16x128xf32>
    %8 = tpu.matmul %0, %7, %cst_9 {dimension_numbers = #tpu.dot_dimension_numbers<[1], [0], [0], [1], [0, 0, 1, 1], [], []>} : vector<16x128xbf16>, vector<128x128xbf16>, vector<16x128xf32> -> vector<16x128xf32>
    %9 = vector.extract_strided_slice %6 {offsets = [0, 0], sizes = [16, 128], strides = [1, 1]} : vector<16x1152xf32> to vector<16x128xf32>
    %10 = arith.addf %8, %9 : vector<16x128xf32>
    %cst_10 = arith.constant 0.000000e+00 : f32
    %11 = vector.broadcast %cst_10 : f32 to vector<16x128xf32>
    %12 = arith.cmpf ogt, %10, %11 : vector<16x128xf32>
    %cst_11 = arith.constant 2.000000e-01 : f32
    %13 = vector.broadcast %cst_11 : f32 to vector<16x128xf32>
    %14 = arith.mulf %13, %10 : vector<16x128xf32>
    %15 = arith.select %12, %10, %14 : vector<16x128xi1>, vector<16x128xf32>
    %16 = arith.truncf %15 : vector<16x128xf32> to vector<16x128xbf16>
    %c0_12 = arith.constant 0 : index
    %c0_13 = arith.constant 0 : index
    %c0_14 = arith.constant 0 : index
    %17 = vector.load %arg6[%c0_12, %c0_13, %c0_14] : memref<4x128x128xbf16, #tpu.memory_space<vmem>>, vector<1x128x128xbf16>
    %18 = vector.shape_cast %17 : vector<1x128x128xbf16> to vector<128x128xbf16>
    %cst_15 = arith.constant dense<0.000000e+00> : vector<16x128xf32>
    %19 = tpu.matmul %16, %18, %cst_15 {dimension_numbers = #tpu.dot_dimension_numbers<[1], [0], [0], [1], [0, 0, 1, 1], [], []>} : vector<16x128xbf16>, vector<128x128xbf16>, vector<16x128xf32> -> vector<16x128xf32>
    %20 = vector.extract_strided_slice %6 {offsets = [0, 128], sizes = [16, 128], strides = [1, 1]} : vector<16x1152xf32> to vector<16x128xf32>
    %21 = arith.addf %19, %20 : vector<16x128xf32>
    %cst_16 = arith.constant 0.000000e+00 : f32
    %22 = vector.broadcast %cst_16 : f32 to vector<16x128xf32>
    %23 = arith.cmpf ogt, %21, %22 : vector<16x128xf32>
    %cst_17 = arith.constant 2.000000e-01 : f32
    %24 = vector.broadcast %cst_17 : f32 to vector<16x128xf32>
    %25 = arith.mulf %24, %21 : vector<16x128xf32>
    %26 = arith.select %23, %21, %25 : vector<16x128xi1>, vector<16x128xf32>
    %27 = arith.truncf %26 : vector<16x128xf32> to vector<16x128xbf16>
    %c0_18 = arith.constant 0 : index
    %c0_19 = arith.constant 0 : index
    %c0_20 = arith.constant 0 : index
    %28 = vector.load %arg7[%c0_18, %c0_19, %c0_20] : memref<4x128x128xbf16, #tpu.memory_space<vmem>>, vector<1x128x128xbf16>
    %29 = vector.shape_cast %28 : vector<1x128x128xbf16> to vector<128x128xbf16>
    %cst_21 = arith.constant dense<0.000000e+00> : vector<16x128xf32>
    %30 = tpu.matmul %27, %29, %cst_21 {dimension_numbers = #tpu.dot_dimension_numbers<[1], [0], [0], [1], [0, 0, 1, 1], [], []>} : vector<16x128xbf16>, vector<128x128xbf16>, vector<16x128xf32> -> vector<16x128xf32>
    %31 = vector.extract_strided_slice %6 {offsets = [0, 256], sizes = [16, 128], strides = [1, 1]} : vector<16x1152xf32> to vector<16x128xf32>
    %32 = arith.addf %30, %31 : vector<16x128xf32>
    %33 = arith.addf %15, %32 : vector<16x128xf32>
    %34 = arith.truncf %33 : vector<16x128xf32> to vector<16x128xbf16>
    %c1 = arith.constant 1 : index
    %c0_22 = arith.constant 0 : index
    %c0_23 = arith.constant 0 : index
    %35 = vector.load %arg6[%c1, %c0_22, %c0_23] : memref<4x128x128xbf16, #tpu.memory_space<vmem>>, vector<1x128x128xbf16>
    %36 = vector.shape_cast %35 : vector<1x128x128xbf16> to vector<128x128xbf16>
    %cst_24 = arith.constant dense<0.000000e+00> : vector<16x128xf32>
    %37 = tpu.matmul %34, %36, %cst_24 {dimension_numbers = #tpu.dot_dimension_numbers<[1], [0], [0], [1], [0, 0, 1, 1], [], []>} : vector<16x128xbf16>, vector<128x128xbf16>, vector<16x128xf32> -> vector<16x128xf32>
    %38 = vector.extract_strided_slice %6 {offsets = [0, 384], sizes = [16, 128], strides = [1, 1]} : vector<16x1152xf32> to vector<16x128xf32>
    %39 = arith.addf %37, %38 : vector<16x128xf32>
    %cst_25 = arith.constant 0.000000e+00 : f32
    %40 = vector.broadcast %cst_25 : f32 to vector<16x128xf32>
    %41 = arith.cmpf ogt, %39, %40 : vector<16x128xf32>
    %cst_26 = arith.constant 2.000000e-01 : f32
    %42 = vector.broadcast %cst_26 : f32 to vector<16x128xf32>
    %43 = arith.mulf %42, %39 : vector<16x128xf32>
    %44 = arith.select %41, %39, %43 : vector<16x128xi1>, vector<16x128xf32>
    %45 = arith.truncf %44 : vector<16x128xf32> to vector<16x128xbf16>
    %c1_27 = arith.constant 1 : index
    %c0_28 = arith.constant 0 : index
    %c0_29 = arith.constant 0 : index
    %46 = vector.load %arg7[%c1_27, %c0_28, %c0_29] : memref<4x128x128xbf16, #tpu.memory_space<vmem>>, vector<1x128x128xbf16>
    %47 = vector.shape_cast %46 : vector<1x128x128xbf16> to vector<128x128xbf16>
    %cst_30 = arith.constant dense<0.000000e+00> : vector<16x128xf32>
    %48 = tpu.matmul %45, %47, %cst_30 {dimension_numbers = #tpu.dot_dimension_numbers<[1], [0], [0], [1], [0, 0, 1, 1], [], []>} : vector<16x128xbf16>, vector<128x128xbf16>, vector<16x128xf32> -> vector<16x128xf32>
    %49 = vector.extract_strided_slice %6 {offsets = [0, 512], sizes = [16, 128], strides = [1, 1]} : vector<16x1152xf32> to vector<16x128xf32>
    %50 = arith.addf %48, %49 : vector<16x128xf32>
    %51 = arith.addf %33, %50 : vector<16x128xf32>
    %52 = arith.truncf %51 : vector<16x128xf32> to vector<16x128xbf16>
    %c2 = arith.constant 2 : index
    %c0_31 = arith.constant 0 : index
    %c0_32 = arith.constant 0 : index
    %53 = vector.load %arg6[%c2, %c0_31, %c0_32] : memref<4x128x128xbf16, #tpu.memory_space<vmem>>, vector<1x128x128xbf16>
    %54 = vector.shape_cast %53 : vector<1x128x128xbf16> to vector<128x128xbf16>
    %cst_33 = arith.constant dense<0.000000e+00> : vector<16x128xf32>
    %55 = tpu.matmul %52, %54, %cst_33 {dimension_numbers = #tpu.dot_dimension_numbers<[1], [0], [0], [1], [0, 0, 1, 1], [], []>} : vector<16x128xbf16>, vector<128x128xbf16>, vector<16x128xf32> -> vector<16x128xf32>
    %56 = vector.extract_strided_slice %6 {offsets = [0, 640], sizes = [16, 128], strides = [1, 1]} : vector<16x1152xf32> to vector<16x128xf32>
    %57 = arith.addf %55, %56 : vector<16x128xf32>
    %cst_34 = arith.constant 0.000000e+00 : f32
    %58 = vector.broadcast %cst_34 : f32 to vector<16x128xf32>
    %59 = arith.cmpf ogt, %57, %58 : vector<16x128xf32>
    %cst_35 = arith.constant 2.000000e-01 : f32
    %60 = vector.broadcast %cst_35 : f32 to vector<16x128xf32>
    %61 = arith.mulf %60, %57 : vector<16x128xf32>
    %62 = arith.select %59, %57, %61 : vector<16x128xi1>, vector<16x128xf32>
    %63 = arith.truncf %62 : vector<16x128xf32> to vector<16x128xbf16>
    %c2_36 = arith.constant 2 : index
    %c0_37 = arith.constant 0 : index
    %c0_38 = arith.constant 0 : index
    %64 = vector.load %arg7[%c2_36, %c0_37, %c0_38] : memref<4x128x128xbf16, #tpu.memory_space<vmem>>, vector<1x128x128xbf16>
    %65 = vector.shape_cast %64 : vector<1x128x128xbf16> to vector<128x128xbf16>
    %cst_39 = arith.constant dense<0.000000e+00> : vector<16x128xf32>
    %66 = tpu.matmul %63, %65, %cst_39 {dimension_numbers = #tpu.dot_dimension_numbers<[1], [0], [0], [1], [0, 0, 1, 1], [], []>} : vector<16x128xbf16>, vector<128x128xbf16>, vector<16x128xf32> -> vector<16x128xf32>
    %67 = vector.extract_strided_slice %6 {offsets = [0, 768], sizes = [16, 128], strides = [1, 1]} : vector<16x1152xf32> to vector<16x128xf32>
    %68 = arith.addf %66, %67 : vector<16x128xf32>
    %69 = arith.addf %51, %68 : vector<16x128xf32>
    %70 = arith.truncf %69 : vector<16x128xf32> to vector<16x128xbf16>
    %c3 = arith.constant 3 : index
    %c0_40 = arith.constant 0 : index
    %c0_41 = arith.constant 0 : index
    %71 = vector.load %arg6[%c3, %c0_40, %c0_41] : memref<4x128x128xbf16, #tpu.memory_space<vmem>>, vector<1x128x128xbf16>
    %72 = vector.shape_cast %71 : vector<1x128x128xbf16> to vector<128x128xbf16>
    %cst_42 = arith.constant dense<0.000000e+00> : vector<16x128xf32>
    %73 = tpu.matmul %70, %72, %cst_42 {dimension_numbers = #tpu.dot_dimension_numbers<[1], [0], [0], [1], [0, 0, 1, 1], [], []>} : vector<16x128xbf16>, vector<128x128xbf16>, vector<16x128xf32> -> vector<16x128xf32>
    %74 = vector.extract_strided_slice %6 {offsets = [0, 896], sizes = [16, 128], strides = [1, 1]} : vector<16x1152xf32> to vector<16x128xf32>
    %75 = arith.addf %73, %74 : vector<16x128xf32>
    %cst_43 = arith.constant 0.000000e+00 : f32
    %76 = vector.broadcast %cst_43 : f32 to vector<16x128xf32>
    %77 = arith.cmpf ogt, %75, %76 : vector<16x128xf32>
    %cst_44 = arith.constant 2.000000e-01 : f32
    %78 = vector.broadcast %cst_44 : f32 to vector<16x128xf32>
    %79 = arith.mulf %78, %75 : vector<16x128xf32>
    %80 = arith.select %77, %75, %79 : vector<16x128xi1>, vector<16x128xf32>
    %81 = arith.truncf %80 : vector<16x128xf32> to vector<16x128xbf16>
    %c3_45 = arith.constant 3 : index
    %c0_46 = arith.constant 0 : index
    %c0_47 = arith.constant 0 : index
    %82 = vector.load %arg7[%c3_45, %c0_46, %c0_47] : memref<4x128x128xbf16, #tpu.memory_space<vmem>>, vector<1x128x128xbf16>
    %83 = vector.shape_cast %82 : vector<1x128x128xbf16> to vector<128x128xbf16>
    %cst_48 = arith.constant dense<0.000000e+00> : vector<16x128xf32>
    %84 = tpu.matmul %81, %83, %cst_48 {dimension_numbers = #tpu.dot_dimension_numbers<[1], [0], [0], [1], [0, 0, 1, 1], [], []>} : vector<16x128xbf16>, vector<128x128xbf16>, vector<16x128xf32> -> vector<16x128xf32>
    %85 = vector.extract_strided_slice %6 {offsets = [0, 1024], sizes = [16, 128], strides = [1, 1]} : vector<16x1152xf32> to vector<16x128xf32>
    %86 = arith.addf %84, %85 : vector<16x128xf32>
    %87 = arith.addf %69, %86 : vector<16x128xf32>
    %88 = arith.truncf %87 : vector<16x128xf32> to vector<16x128xbf16>
    %c0_49 = arith.constant 0 : index
    %c0_50 = arith.constant 0 : index
    %89 = vector.load %arg8[%c0_49, %c0_50] : memref<128x128xbf16, #tpu.memory_space<vmem>>, vector<128x128xbf16>
    %cst_51 = arith.constant dense<0.000000e+00> : vector<16x128xf32>
    %90 = tpu.matmul %88, %89, %cst_51 {dimension_numbers = #tpu.dot_dimension_numbers<[1], [0], [0], [1], [0, 0, 1, 1], [], []>} : vector<16x128xbf16>, vector<128x128xbf16>, vector<16x128xf32> -> vector<16x128xf32>
    %c0_52 = arith.constant 0 : index
    %c0_53 = arith.constant 0 : index
    %91 = vector.load %arg9[%c0_52, %c0_53] : memref<1x128xf32, #tpu.memory_space<vmem>>, vector<1x128xf32>
    %92 = vector.broadcast %91 : vector<1x128xf32> to vector<16x128xf32>
    %93 = arith.addf %90, %92 : vector<16x128xf32>
    %c0_54 = arith.constant 0 : index
    %c0_55 = arith.constant 0 : index
    %94 = vector.load %arg10[%c0_54, %c0_55] : memref<16x128xf32, #tpu.memory_space<vmem>>, vector<16x128xf32>
    tpu.vector_store %arg10[%c0_54, %c0_55], %93 {strides = array<i32>} : memref<16x128xf32, #tpu.memory_space<vmem>>, vector<16x128xf32>,
    return
  }
  func.func @transform_0(%arg0: i32) -> (i32, i32) {
    %c0_i32 = arith.constant 0 : i32
    %c0_i32_0 = arith.constant 0 : i32
    return %arg0, %c0_i32 : i32, i32
  }
  func.func @transform_1(%arg0: i32) -> (i32, i32) {
    %c0_i32 = arith.constant 0 : i32
    %c0_i32_0 = arith.constant 0 : i32
    return %arg0, %c0_i32 : i32, i32
  }
  func.func @transform_2(%arg0: i32) -> (i32, i32) {
    %c0_i32 = arith.constant 0 : i32
    %c0_i32_0 = arith.constant 0 : i32
    %c0_i32_1 = arith.constant 0 : i32
    return %c0_i32, %c0_i32_0 : i32, i32
  }
  func.func @transform_3(%arg0: i32) -> (i32, i32) {
    %c0_i32 = arith.constant 0 : i32
    %c0_i32_0 = arith.constant 0 : i32
    %c0_i32_1 = arith.constant 0 : i32
    return %c0_i32, %c0_i32_0 : i32, i32
  }
  func.func @transform_4(%arg0: i32) -> (i32, i32) {
    %c0_i32 = arith.constant 0 : i32
    %c0_i32_0 = arith.constant 0 : i32
    %c0_i32_1 = arith.constant 0 : i32
    return %c0_i32, %c0_i32_0 : i32, i32
  }
  func.func @transform_5(%arg0: i32) -> (i32, i32, i32) {
    %c0_i32 = arith.constant 0 : i32
    %c0_i32_0 = arith.constant 0 : i32
    %c0_i32_1 = arith.constant 0 : i32
    %c0_i32_2 = arith.constant 0 : i32
    return %c0_i32, %c0_i32_0, %c0_i32_1 : i32, i32, i32
  }
  func.func @transform_6(%arg0: i32) -> (i32, i32, i32) {
    %c0_i32 = arith.constant 0 : i32
    %c0_i32_0 = arith.constant 0 : i32
    %c0_i32_1 = arith.constant 0 : i32
    %c0_i32_2 = arith.constant 0 : i32
    return %c0_i32, %c0_i32_0, %c0_i32_1 : i32, i32, i32
  }
  func.func @transform_7(%arg0: i32) -> (i32, i32) {
    %c0_i32 = arith.constant 0 : i32
    %c0_i32_0 = arith.constant 0 : i32
    %c0_i32_1 = arith.constant 0 : i32
    return %c0_i32, %c0_i32_0 : i32, i32
  }
  func.func @transform_8(%arg0: i32) -> (i32, i32) {
    %c0_i32 = arith.constant 0 : i32
    %c0_i32_0 = arith.constant 0 : i32
    %c0_i32_1 = arith.constant 0 : i32
    return %c0_i32, %c0_i32_0 : i32, i32
  }
  func.func @transform_9(%arg0: i32) -> (i32, i32) {
    %c0_i32 = arith.constant 0 : i32
    %c0_i32_0 = arith.constant 0 : i32
    return %arg0, %c0_i32 : i32, i32
  }
}

</mosaic_0001>

<llo_original>
// kernel: tpu_custom_call.1
$region0: #{tpu_custom_call.1}
  #allocation0 [shape = 'u32[]', space=smem, size = 0x4, offset = 0x4, fixed_abs, tag = 'smem constant byte address 0x4 - core index']
  #allocation1 [shape = 'u32[72,128]{1,0:T(1,128)}', space=vmem, size = 0x9000, scoped, tag = 'internal scratch']
  %s0 = inlined_call_operand.hbm [shape: bf16[16,128], index: 0, kind: input, shape index: {}]
  %s1 = inlined_call_operand.vmem [shape: bf16[16,8], index: 1, kind: input, shape index: {}]
  %s2 = inlined_call_operand.hbm [shape: bf16[128,128], index: 2, kind: input, shape index: {}]
  %s3 = inlined_call_operand.hbm [shape: bf16[8,1152], index: 3, kind: input, shape index: {}]
  %s4 = inlined_call_operand.vmem [shape: f32[1,1152], index: 4, kind: input, shape index: {}]
  %s5 = inlined_call_operand.hbm [shape: bf16[4,128,128], index: 5, kind: input, shape index: {}]
  %s6 = inlined_call_operand.hbm [shape: bf16[4,128,128], index: 6, kind: input, shape index: {}]
  %s7 = inlined_call_operand.hbm [shape: bf16[128,128], index: 7, kind: input, shape index: {}]
  %s8 = inlined_call_operand.vmem [shape: f32[1,128], index: 8, kind: input, shape index: {}]
  %s9 = inlined_call_operand.hbm [shape: f32[16,128], index: 9, kind: output, shape index: {}]
  %s10 = sld [smem:[#allocation0]]
  $region70: #{tpu_custom_call.1} parent=0
    _
  %s12 = ssub.s32 1, %s10
  %s13 = scalar_select 0, %s12, %s10
  $region1: #{tpu_custom_call.1} parent=0
    #allocation2 [shape = 'u8[4096]{0}', space=vmem, size = 0x1000, scoped, tag = 'input window, operand 0, single buffered']
    #allocation3 [shape = 's32[1]{0}', space=sflag, size = 0x4, scoped, tag = 'scoped memory for tpu_custom_call.1']
    #allocation4 [shape = 's32[1]{0}', space=sflag, size = 0x4, scoped, tag = 'scoped memory for tpu_custom_call.1']
    #allocation5 [shape = 'u8[32768]{0}', space=vmem, size = 0x8000, scoped, tag = 'input window, operand 2, single buffered']
    #allocation6 [shape = 's32[1]{0}', space=sflag, size = 0x4, scoped, tag = 'scoped memory for tpu_custom_call.1']
    #allocation7 [shape = 'u8[18432]{0}', space=vmem, size = 0x4800, scoped, tag = 'input window, operand 3, single buffered']
    #allocation8 [shape = 'u8[131072]{0}', space=vmem, size = 0x20000, scoped, tag = 'input window, operand 5, single buffered']
    #allocation9 [shape = 's32[1]{0}', space=sflag, size = 0x4, scoped, tag = 'scoped memory for tpu_custom_call.1']
    #allocation10 [shape = 'u8[131072]{0}', space=vmem, size = 0x20000, scoped, tag = 'input window, operand 6, single buffered']
    #allocation11 [shape = 'u8[32768]{0}', space=vmem, size = 0x8000, scoped, tag = 'input window, operand 7, single buffered']
    #allocation12 [shape = 's32[1]{0}', space=sflag, size = 0x4, scoped, tag = 'scoped memory for tpu_custom_call.1']
    #allocation13 [shape = 'u8[8192]{0}', space=vmem, size = 0x2000, scoped, tag = 'output window, operand 0, single buffered']
    %14 = vsyncpa [#allocation3], 0
    %15 = vsyncpa [#allocation6], 0
    %16 = vsyncpa [#allocation9], 0
    %17 = vsyncpa [#allocation12], 0
    %18 = vsyncpa [#allocation4], 0
    // Predicated region
    $region2: #{tpu_custom_call.1} parent=1 // pred_check
      _
    $region3: #{tpu_custom_call.1} parent=1 // pred_check_branch
      %20 = sbr.rel (0) target = $region5
    $region4: #{tpu_custom_call.1} parent=1 // pred_region
      %22 = vsyncadd [#allocation3], 0
      %s23 = sshll.u32 %s0, 4
      %s24 = int_to_ptr.hbm [resolvable:$true] %s23
      %s25 = sshll.u32 [#allocation2], 4
      %s26 = int_to_ptr.vmem [resolvable:$true] %s25
      %31 = dma.hbm_to_vmem [thread:$0]  %s24, 128, %s26, [#allocation3], 64, 64, 4
    $region5: #{tpu_custom_call.1} parent=1 // pred_fallthru
      _
    // Predicated region
    $region6: #{tpu_custom_call.1} parent=1 // pred_check
      _
    $region7: #{tpu_custom_call.1} parent=1 // pred_check_branch
      %33 = sbr.rel (0) target = $region9
    $region8: #{tpu_custom_call.1} parent=1 // pred_region
      _
    $region9: #{tpu_custom_call.1} parent=1 // pred_fallthru
      _
    // Predicated region
    $region10: #{tpu_custom_call.1} parent=1 // pred_check
      _
    $region11: #{tpu_custom_call.1} parent=1 // pred_check_branch
      %35 = sbr.rel (0) target = $region13
    $region12: #{tpu_custom_call.1} parent=1 // pred_region
      %37 = vsyncadd [#allocation6], 0
      %s38 = sshll.u32 %s2, 4
      %s39 = int_to_ptr.hbm [resolvable:$true] %s38
      %s40 = sshll.u32 [#allocation5], 4
      %s41 = int_to_ptr.vmem [resolvable:$true] %s40
      %46 = dma.hbm_to_vmem [thread:$0]  %s39, 1024, %s41, [#allocation6], 64, 64, 4
    $region13: #{tpu_custom_call.1} parent=1 // pred_fallthru
      _
    // Predicated region
    $region14: #{tpu_custom_call.1} parent=1 // pred_check
      _
    $region15: #{tpu_custom_call.1} parent=1 // pred_check_branch
      %48 = sbr.rel (0) target = $region17
    $region16: #{tpu_custom_call.1} parent=1 // pred_region
      %50 = vsyncadd [#allocation6], 0
      %s52 = sshll.u32 %s3, 4
      %s53 = int_to_ptr.hbm [resolvable:$true] %s52
      %s54 = sshll.u32 [#allocation7], 4
      %s55 = int_to_ptr.vmem [resolvable:$true] %s54
      %57 = dma.hbm_to_vmem [thread:$0]  %s53, 576, %s55, [#allocation6]
    $region17: #{tpu_custom_call.1} parent=1 // pred_fallthru
      _
    // Predicated region
    $region18: #{tpu_custom_call.1} parent=1 // pred_check
      _
    $region19: #{tpu_custom_call.1} parent=1 // pred_check_branch
      %59 = sbr.rel (0) target = $region21
    $region20: #{tpu_custom_call.1} parent=1 // pred_region
      _
    $region21: #{tpu_custom_call.1} parent=1 // pred_fallthru
      _
    // Predicated region
    $region22: #{tpu_custom_call.1} parent=1 // pred_check
      _
    $region23: #{tpu_custom_call.1} parent=1 // pred_check_branch
      %61 = sbr.rel (0) target = $region25
    $region24: #{tpu_custom_call.1} parent=1 // pred_region
      %63 = vsyncadd [#allocation9], 0
      %s64 = sshll.u32 %s5, 4
      %s65 = int_to_ptr.hbm [resolvable:$true] %s64
      %s66 = sshll.u32 [#allocation8], 4
      %s67 = int_to_ptr.vmem [resolvable:$true] %s66
      %72 = dma.hbm_to_vmem [thread:$0]  %s65, 4096, %s67, [#allocation9], 64, 64, 4
    $region25: #{tpu_custom_call.1} parent=1 // pred_fallthru
      _
    // Predicated region
    $region26: #{tpu_custom_call.1} parent=1 // pred_check
      _
    $region27: #{tpu_custom_call.1} parent=1 // pred_check_branch
      %74 = sbr.rel (0) target = $region29
    $region28: #{tpu_custom_call.1} parent=1 // pred_region
      %76 = vsyncadd [#allocation9], 0
      %s77 = sshll.u32 %s6, 4
      %s78 = int_to_ptr.hbm [resolvable:$true] %s77
      %s79 = sshll.u32 [#allocation10], 4
      %s80 = int_to_ptr.vmem [resolvable:$true] %s79
      %85 = dma.hbm_to_vmem [thread:$0]  %s78, 4096, %s80, [#allocation9], 64, 64, 4
    $region29: #{tpu_custom_call.1} parent=1 // pred_fallthru
      _
    // Predicated region
    $region30: #{tpu_custom_call.1} parent=1 // pred_check
      _
    $region31: #{tpu_custom_call.1} parent=1 // pred_check_branch
      %87 = sbr.rel (0) target = $region33
    $region32: #{tpu_custom_call.1} parent=1 // pred_region
      %89 = vsyncadd [#allocation12], 0
      %s90 = sshll.u32 %s7, 4
      %s91 = int_to_ptr.hbm [resolvable:$true] %s90
      %s92 = sshll.u32 [#allocation11], 4
      %s93 = int_to_ptr.vmem [resolvable:$true] %s92
      %98 = dma.hbm_to_vmem [thread:$0]  %s91, 1024, %s93, [#allocation12], 64, 64, 4
    $region33: #{tpu_custom_call.1} parent=1 // pred_fallthru
      _
    // Predicated region
    $region34: #{tpu_custom_call.1} parent=1 // pred_check
      _
    $region35: #{tpu_custom_call.1} parent=1 // pred_check_branch
      %100 = sbr.rel (0) target = $region37
    $region36: #{tpu_custom_call.1} parent=1 // pred_region
      _
    $region37: #{tpu_custom_call.1} parent=1 // pred_fallthru
      _
    // Predicated region
    $region38: #{tpu_custom_call.1} parent=1 // pred_check
      _
    $region39: #{tpu_custom_call.1} parent=1 // pred_check_branch
      %102 = sbr.rel (0) target = $region41
    $region40: #{tpu_custom_call.1} parent=1 // pred_region
      %104 = dma.done [#allocation3], 128
    $region41: #{tpu_custom_call.1} parent=1 // pred_fallthru
      _
    // Predicated region
    $region42: #{tpu_custom_call.1} parent=1 // pred_check
      _
    $region43: #{tpu_custom_call.1} parent=1 // pred_check_branch
      %106 = sbr.rel (0) target = $region45
    $region44: #{tpu_custom_call.1} parent=1 // pred_region
      %108 = dma.done [#allocation6], 1024
    $region45: #{tpu_custom_call.1} parent=1 // pred_fallthru
      _
    // Predicated region
    $region46: #{tpu_custom_call.1} parent=1 // pred_check
      _
    $region47: #{tpu_custom_call.1} parent=1 // pred_check_branch
      %110 = sbr.rel (0) target = $region49
    $region48: #{tpu_custom_call.1} parent=1 // pred_region
      %112 = dma.done [#allocation6], 576
    $region49: #{tpu_custom_call.1} parent=1 // pred_fallthru
      _
    // Predicated region
    $region50: #{tpu_custom_call.1} parent=1 // pred_check
      _
    $region51: #{tpu_custom_call.1} parent=1 // pred_check_branch
      %114 = sbr.rel (0) target = $region53
    $region52: #{tpu_custom_call.1} parent=1 // pred_region
      %116 = dma.done [#allocation9], 4096
    $region53: #{tpu_custom_call.1} parent=1 // pred_fallthru
      _
    // Predicated region
    $region54: #{tpu_custom_call.1} parent=1 // pred_check
      _
    $region55: #{tpu_custom_call.1} parent=1 // pred_check_branch
      %118 = sbr.rel (0) target = $region57
    $region56: #{tpu_custom_call.1} parent=1 // pred_region
      %120 = dma.done [#allocation9], 4096
    $region57: #{tpu_custom_call.1} parent=1 // pred_fallthru
      _
    // Predicated region
    $region58: #{tpu_custom_call.1} parent=1 // pred_check
      _
    $region59: #{tpu_custom_call.1} parent=1 // pred_check_branch
      %122 = sbr.rel (0) target = $region61
    $region60: #{tpu_custom_call.1} parent=1 // pred_region
      %124 = dma.done [#allocation12], 1024
    $region61: #{tpu_custom_call.1} parent=1 // pred_fallthru
      _
    %v126 = vld [vmem:[#allocation2] sm:$0xf]
    %v127 = vld [vmem:[#allocation2 + $0x4] sm:$0xf]
    %v128 = vld [vmem:[%s1] sm:$0xf]
    %v129 = vld [vmem:[%s1 + $0x4] sm:$0xf]
    %v130 = vld [vmem:[#allocation7] sm:$0xff]
    %v131 = vld [vmem:[#allocation7 + $0x8] sm:$0xff]
    %v132 = vld [vmem:[#allocation7 + $0x10] sm:$0xff]
    %v133 = vld [vmem:[#allocation7 + $0x18] sm:$0xff]
    %v134 = vld [vmem:[#allocation7 + $0x20] sm:$0xf]
    %v135 = vld [vmem:[%s4] sm:$0xff]
    %v136 = vld [vmem:[%s4 + $0x8] sm:$0x1]
    %v139 = vperm.slane %v135, 0
    %v140 = vperm.slane %v135, 1
    %v141 = vperm.slane %v135, 2
    %v142 = vperm.slane %v135, 3
    %v143 = vperm.slane %v135, 4
    %v144 = vperm.slane %v135, 5
    %v145 = vperm.slane %v135, 6
    %v146 = vperm.slane %v135, 7
    %v147 = vperm.slane %v136, 0
    %v159 = vunpack.c.l.b16 %v128
    %v160 = vunpack.c.l.b16 %v129
    %v161 = vpack.c.b16 %v160, %v159
    %v167 = vunpack.c.l.b16 %v130
    %v168 = vunpack.c.h.b16 %v130
    %v169 = vunpack.c.l.b16 %v131
    %v170 = vunpack.c.h.b16 %v131
    %v171 = vunpack.c.l.b16 %v132
    %v172 = vunpack.c.h.b16 %v132
    %v173 = vunpack.c.l.b16 %v133
    %v174 = vunpack.c.h.b16 %v133
    %v175 = vunpack.c.l.b16 %v134
    %v176 = vpack.c.b16 %v167, %v167
    %v177 = vpack.c.b16 %v168, %v168
    %v178 = vpack.c.b16 %v169, %v169
    %v179 = vpack.c.b16 %v170, %v170
    %v180 = vpack.c.b16 %v171, %v171
    %v181 = vpack.c.b16 %v172, %v172
    %v182 = vpack.c.b16 %v173, %v173
    %v183 = vpack.c.b16 %v174, %v174
    %v184 = vpack.c.b16 %v175, %v175
    %vm185 = vcmask 64512
    %v187 = vsel %vm185, %v161, 0
    %vm189 = vcmask 1043456
    %v191 = vsel %vm189, %v176, 0
    %v194 = vsel %vm189, %v177, 0
    %v197 = vsel %vm189, %v178, 0
    %v200 = vsel %vm189, %v179, 0
    %v203 = vsel %vm189, %v180, 0
    %v206 = vsel %vm189, %v181, 0
    %v209 = vsel %vm189, %v182, 0
    %v212 = vsel %vm189, %v183, 0
    %v215 = vsel %vm189, %v184, 0
    %217 = vmatpush.bf16.msra.mxu0 0
    %218 = vmatpush.bf16.msra.mxu0 0
    %219 = vmatpush.bf16.msra.mxu0 0
    %220 = vmatpush.bf16.msra.mxu0 0
    %221 = vmatpush.bf16.msra.mxu0 0
    %222 = vmatpush.bf16.msra.mxu0 0
    %223 = vmatpush.bf16.msra.mxu0 0
    %224 = vmatpush.bf16.msra.mxu0 %v191
    %225 = vmatmul.bf16.gmra.mxu0 %v187
    %v226 = vpop.f32.mrf.mxu0
    %v227 = vadd.f32 %v139, %v226
    %v228 = vpop.f32.mrf.mxu0
    %v229 = vadd.f32 %v139, %v228
    %230 = vdwg.mxu0
    %231 = vmatpush.bf16.msra.mxu0 0
    %232 = vmatpush.bf16.msra.mxu0 0
    %233 = vmatpush.bf16.msra.mxu0 0
    %234 = vmatpush.bf16.msra.mxu0 0
    %235 = vmatpush.bf16.msra.mxu0 0
    %236 = vmatpush.bf16.msra.mxu0 0
    %237 = vmatpush.bf16.msra.mxu0 0
    %238 = vmatpush.bf16.msra.mxu0 %v194
    %239 = vmatmul.bf16.gmra.mxu0 %v187
    %v240 = vpop.f32.mrf.mxu0
    %v241 = vadd.f32 %v140, %v240
    %v242 = vpop.f32.mrf.mxu0
    %v243 = vadd.f32 %v140, %v242
    %244 = vdwg.mxu0
    %245 = vmatpush.bf16.msra.mxu0 0
    %246 = vmatpush.bf16.msra.mxu0 0
    %247 = vmatpush.bf16.msra.mxu0 0
    %248 = vmatpush.bf16.msra.mxu0 0
    %249 = vmatpush.bf16.msra.mxu0 0
    %250 = vmatpush.bf16.msra.mxu0 0
    %251 = vmatpush.bf16.msra.mxu0 0
    %252 = vmatpush.bf16.msra.mxu0 %v197
    %253 = vmatmul.bf16.gmra.mxu0 %v187
    %v254 = vpop.f32.mrf.mxu0
    %v255 = vadd.f32 %v141, %v254
    %v256 = vpop.f32.mrf.mxu0
    %v257 = vadd.f32 %v141, %v256
    %258 = vdwg.mxu0
    %259 = vmatpush.bf16.msra.mxu0 0
    %260 = vmatpush.bf16.msra.mxu0 0
    %261 = vmatpush.bf16.msra.mxu0 0
    %262 = vmatpush.bf16.msra.mxu0 0
    %263 = vmatpush.bf16.msra.mxu0 0
    %264 = vmatpush.bf16.msra.mxu0 0
    %265 = vmatpush.bf16.msra.mxu0 0
    %266 = vmatpush.bf16.msra.mxu0 %v200
    %267 = vmatmul.bf16.gmra.mxu0 %v187
    %v268 = vpop.f32.mrf.mxu0
    %v269 = vadd.f32 %v142, %v268
    %v270 = vpop.f32.mrf.mxu0
    %v271 = vadd.f32 %v142, %v270
    %272 = vdwg.mxu0
    %273 = vmatpush.bf16.msra.mxu0 0
    %274 = vmatpush.bf16.msra.mxu0 0
    %275 = vmatpush.bf16.msra.mxu0 0
    %276 = vmatpush.bf16.msra.mxu0 0
    %277 = vmatpush.bf16.msra.mxu0 0
    %278 = vmatpush.bf16.msra.mxu0 0
    %279 = vmatpush.bf16.msra.mxu0 0
    %280 = vmatpush.bf16.msra.mxu0 %v203
    %281 = vmatmul.bf16.gmra.mxu0 %v187
    %v282 = vpop.f32.mrf.mxu0
    %v283 = vadd.f32 %v143, %v282
    %v284 = vpop.f32.mrf.mxu0
    %v285 = vadd.f32 %v143, %v284
    %286 = vdwg.mxu0
    %287 = vmatpush.bf16.msra.mxu0 0
    %288 = vmatpush.bf16.msra.mxu0 0
    %289 = vmatpush.bf16.msra.mxu0 0
    %290 = vmatpush.bf16.msra.mxu0 0
    %291 = vmatpush.bf16.msra.mxu0 0
    %292 = vmatpush.bf16.msra.mxu0 0
    %293 = vmatpush.bf16.msra.mxu0 0
    %294 = vmatpush.bf16.msra.mxu0 %v206
    %295 = vmatmul.bf16.gmra.mxu0 %v187
    %v296 = vpop.f32.mrf.mxu0
    %v297 = vadd.f32 %v144, %v296
    %v298 = vpop.f32.mrf.mxu0
    %v299 = vadd.f32 %v144, %v298
    %300 = vdwg.mxu0
    %301 = vmatpush.bf16.msra.mxu0 0
    %302 = vmatpush.bf16.msra.mxu0 0
    %303 = vmatpush.bf16.msra.mxu0 0
    %304 = vmatpush.bf16.msra.mxu0 0
    %305 = vmatpush.bf16.msra.mxu0 0
    %306 = vmatpush.bf16.msra.mxu0 0
    %307 = vmatpush.bf16.msra.mxu0 0
    %308 = vmatpush.bf16.msra.mxu0 %v209
    %309 = vmatmul.bf16.gmra.mxu0 %v187
    %v310 = vpop.f32.mrf.mxu0
    %v311 = vadd.f32 %v145, %v310
    %v312 = vpop.f32.mrf.mxu0
    %v313 = vadd.f32 %v145, %v312
    %314 = vdwg.mxu0
    %315 = vmatpush.bf16.msra.mxu0 0
    %316 = vmatpush.bf16.msra.mxu0 0
    %317 = vmatpush.bf16.msra.mxu0 0
    %318 = vmatpush.bf16.msra.mxu0 0
    %319 = vmatpush.bf16.msra.mxu0 0
    %320 = vmatpush.bf16.msra.mxu0 0
    %321 = vmatpush.bf16.msra.mxu0 0
    %322 = vmatpush.bf16.msra.mxu0 %v212
    %323 = vmatmul.bf16.gmra.mxu0 %v187
    %v324 = vpop.f32.mrf.mxu0
    %v325 = vadd.f32 %v146, %v324
    %v326 = vpop.f32.mrf.mxu0
    %v327 = vadd.f32 %v146, %v326
    %328 = vdwg.mxu0
    %329 = vmatpush.bf16.msra.mxu0 0
    %330 = vmatpush.bf16.msra.mxu0 0
    %331 = vmatpush.bf16.msra.mxu0 0
    %332 = vmatpush.bf16.msra.mxu0 0
    %333 = vmatpush.bf16.msra.mxu0 0
    %334 = vmatpush.bf16.msra.mxu0 0
    %335 = vmatpush.bf16.msra.mxu0 0
    %336 = vmatpush.bf16.msra.mxu0 %v215
    %337 = vmatmul.bf16.gmra.mxu0 %v187
    %v338 = vpop.f32.mrf.mxu0
    %v339 = vadd.f32 %v147, %v338
    %v340 = vpop.f32.mrf.mxu0
    %v341 = vadd.f32 %v147, %v340
    %342 = vdwg.mxu0
    %v343 = vld [vmem:[#allocation5] sm:$0xf]
    %v344 = vld [vmem:[#allocation5 + $0x4] sm:$0xf]
    %v345 = vld [vmem:[#allocation5 + $0x8] sm:$0xf]
    %v346 = vld [vmem:[#allocation5 + $0xc] sm:$0xf]
    %v347 = vld [vmem:[#allocation5 + $0x10] sm:$0xf]
    %v348 = vld [vmem:[#allocation5 + $0x14] sm:$0xf]
    %v349 = vld [vmem:[#allocation5 + $0x18] sm:$0xf]
    %v350 = vld [vmem:[#allocation5 + $0x1c] sm:$0xf]
    %v351 = vld [vmem:[#allocation5 + $0x20] sm:$0xf]
    %v352 = vld [vmem:[#allocation5 + $0x24] sm:$0xf]
    %v353 = vld [vmem:[#allocation5 + $0x28] sm:$0xf]
    %v354 = vld [vmem:[#allocation5 + $0x2c] sm:$0xf]
    %v355 = vld [vmem:[#allocation5 + $0x30] sm:$0xf]
    %v356 = vld [vmem:[#allocation5 + $0x34] sm:$0xf]
    %v357 = vld [vmem:[#allocation5 + $0x38] sm:$0xf]
    %v358 = vld [vmem:[#allocation5 + $0x3c] sm:$0xf]
    %v361 = vunpack.c.l.b16 %v126
    %v362 = vunpack.c.l.b16 %v127
    %v363 = vpack.c.b16 %v362, %v361
    %v381 = vunpack.c.l.b16 %v343
    %v382 = vunpack.c.l.b16 %v344
    %v383 = vunpack.c.l.b16 %v345
    %v384 = vunpack.c.l.b16 %v346
    %v385 = vunpack.c.l.b16 %v347
    %v386 = vunpack.c.l.b16 %v348
    %v387 = vunpack.c.l.b16 %v349
    %v388 = vunpack.c.l.b16 %v350
    %v389 = vunpack.c.l.b16 %v351
    %v390 = vunpack.c.l.b16 %v352
    %v391 = vunpack.c.l.b16 %v353
    %v392 = vunpack.c.l.b16 %v354
    %v393 = vunpack.c.l.b16 %v355
    %v394 = vunpack.c.l.b16 %v356
    %v395 = vunpack.c.l.b16 %v357
    %v396 = vunpack.c.l.b16 %v358
    %v397 = vpack.c.b16 %v382, %v381
    %v398 = vpack.c.b16 %v384, %v383
    %v399 = vpack.c.b16 %v386, %v385
    %v400 = vpack.c.b16 %v388, %v387
    %v401 = vpack.c.b16 %v390, %v389
    %v402 = vpack.c.b16 %v392, %v391
    %v403 = vpack.c.b16 %v394, %v393
    %v404 = vpack.c.b16 %v396, %v395
    %413 = vmatpush.bf16.msra.mxu0 %v404
    %414 = vmatpush.bf16.msra.mxu0 %v403
    %415 = vmatpush.bf16.msra.mxu0 %v402
    %416 = vmatpush.bf16.msra.mxu0 %v401
    %417 = vmatpush.bf16.msra.mxu0 %v400
    %418 = vmatpush.bf16.msra.mxu0 %v399
    %419 = vmatpush.bf16.msra.mxu0 %v398
    %420 = vmatpush.bf16.msra.mxu0 %v397
    %421 = vmatmul.bf16.gmra.mxu0 %v363
    %v422 = vpop.f32.mrf.mxu0
    %v423 = vadd.f32 %v227, %v422
    %v424 = vpop.f32.mrf.mxu0
    %v425 = vadd.f32 %v229, %v424
    %426 = vdwg.mxu0
    %vm427 = vcmp.gt.f32.partialorder %v423, 0.0
    %vm428 = vcmp.gt.f32.partialorder %v425, 0.0
    %v429 = vmul.f32 %v423, 0.2
    %v430 = vmul.f32 %v425, 0.2
    %v431 = vsel %vm427, %v423, %v429
    %v432 = vsel %vm428, %v425, %v430
    %v433 = vpack.c.bf16 %v432, %v431
    %v434 = vld [vmem:[#allocation8] sm:$0xf]
    %v435 = vld [vmem:[#allocation8 + $0x4] sm:$0xf]
    %v436 = vld [vmem:[#allocation8 + $0x8] sm:$0xf]
    %v437 = vld [vmem:[#allocation8 + $0xc] sm:$0xf]
    %v438 = vld [vmem:[#allocation8 + $0x10] sm:$0xf]
    %v439 = vld [vmem:[#allocation8 + $0x14] sm:$0xf]
    %v440 = vld [vmem:[#allocation8 + $0x18] sm:$0xf]
    %v441 = vld [vmem:[#allocation8 + $0x1c] sm:$0xf]
    %v442 = vld [vmem:[#allocation8 + $0x20] sm:$0xf]
    %v443 = vld [vmem:[#allocation8 + $0x24] sm:$0xf]
    %v444 = vld [vmem:[#allocation8 + $0x28] sm:$0xf]
    %v445 = vld [vmem:[#allocation8 + $0x2c] sm:$0xf]
    %v446 = vld [vmem:[#allocation8 + $0x30] sm:$0xf]
    %v447 = vld [vmem:[#allocation8 + $0x34] sm:$0xf]
    %v448 = vld [vmem:[#allocation8 + $0x38] sm:$0xf]
    %v449 = vld [vmem:[#allocation8 + $0x3c] sm:$0xf]
    %v466 = vunpack.c.l.b16 %v434
    %v467 = vunpack.c.l.b16 %v435
    %v468 = vunpack.c.l.b16 %v436
    %v469 = vunpack.c.l.b16 %v437
    %v470 = vunpack.c.l.b16 %v438
    %v471 = vunpack.c.l.b16 %v439
    %v472 = vunpack.c.l.b16 %v440
    %v473 = vunpack.c.l.b16 %v441
    %v474 = vunpack.c.l.b16 %v442
    %v475 = vunpack.c.l.b16 %v443
    %v476 = vunpack.c.l.b16 %v444
    %v477 = vunpack.c.l.b16 %v445
    %v478 = vunpack.c.l.b16 %v446
    %v479 = vunpack.c.l.b16 %v447
    %v480 = vunpack.c.l.b16 %v448
    %v481 = vunpack.c.l.b16 %v449
    %v482 = vpack.c.b16 %v467, %v466
    %v483 = vpack.c.b16 %v469, %v468
    %v484 = vpack.c.b16 %v471, %v470
    %v485 = vpack.c.b16 %v473, %v472
    %v486 = vpack.c.b16 %v475, %v474
    %v487 = vpack.c.b16 %v477, %v476
    %v488 = vpack.c.b16 %v479, %v478
    %v489 = vpack.c.b16 %v481, %v480
    %498 = vmatpush.bf16.msra.mxu0 %v489
    %499 = vmatpush.bf16.msra.mxu0 %v488
    %500 = vmatpush.bf16.msra.mxu0 %v487
    %501 = vmatpush.bf16.msra.mxu0 %v486
    %502 = vmatpush.bf16.msra.mxu0 %v485
    %503 = vmatpush.bf16.msra.mxu0 %v484
    %504 = vmatpush.bf16.msra.mxu0 %v483
    %505 = vmatpush.bf16.msra.mxu0 %v482
    %506 = vmatmul.bf16.gmra.mxu0 %v433
    %v507 = vpop.f32.mrf.mxu0
    %v508 = vadd.f32 %v241, %v507
    %v509 = vpop.f32.mrf.mxu0
    %v510 = vadd.f32 %v243, %v509
    %511 = vdwg.mxu0
    %vm512 = vcmp.gt.f32.partialorder %v508, 0.0
    %vm513 = vcmp.gt.f32.partialorder %v510, 0.0
    %v514 = vmul.f32 %v508, 0.2
    %v515 = vmul.f32 %v510, 0.2
    %v516 = vsel %vm512, %v508, %v514
    %v517 = vsel %vm513, %v510, %v515
    %v518 = vpack.c.bf16 %v517, %v516
    %v519 = vld [vmem:[#allocation10] sm:$0xf]
    %v520 = vld [vmem:[#allocation10 + $0x4] sm:$0xf]
    %v521 = vld [vmem:[#allocation10 + $0x8] sm:$0xf]
    %v522 = vld [vmem:[#allocation10 + $0xc] sm:$0xf]
    %v523 = vld [vmem:[#allocation10 + $0x10] sm:$0xf]
    %v524 = vld [vmem:[#allocation10 + $0x14] sm:$0xf]
    %v525 = vld [vmem:[#allocation10 + $0x18] sm:$0xf]
    %v526 = vld [vmem:[#allocation10 + $0x1c] sm:$0xf]
    %v527 = vld [vmem:[#allocation10 + $0x20] sm:$0xf]
    %v528 = vld [vmem:[#allocation10 + $0x24] sm:$0xf]
    %v529 = vld [vmem:[#allocation10 + $0x28] sm:$0xf]
    %v530 = vld [vmem:[#allocation10 + $0x2c] sm:$0xf]
    %v531 = vld [vmem:[#allocation10 + $0x30] sm:$0xf]
    %v532 = vld [vmem:[#allocation10 + $0x34] sm:$0xf]
    %v533 = vld [vmem:[#allocation10 + $0x38] sm:$0xf]
    %v534 = vld [vmem:[#allocation10 + $0x3c] sm:$0xf]
    %v551 = vunpack.c.l.b16 %v519
    %v552 = vunpack.c.l.b16 %v520
    %v553 = vunpack.c.l.b16 %v521
    %v554 = vunpack.c.l.b16 %v522
    %v555 = vunpack.c.l.b16 %v523
    %v556 = vunpack.c.l.b16 %v524
    %v557 = vunpack.c.l.b16 %v525
    %v558 = vunpack.c.l.b16 %v526
    %v559 = vunpack.c.l.b16 %v527
    %v560 = vunpack.c.l.b16 %v528
    %v561 = vunpack.c.l.b16 %v529
    %v562 = vunpack.c.l.b16 %v530
    %v563 = vunpack.c.l.b16 %v531
    %v564 = vunpack.c.l.b16 %v532
    %v565 = vunpack.c.l.b16 %v533
    %v566 = vunpack.c.l.b16 %v534
    %v567 = vpack.c.b16 %v552, %v551
    %v568 = vpack.c.b16 %v554, %v553
    %v569 = vpack.c.b16 %v556, %v555
    %v570 = vpack.c.b16 %v558, %v557
    %v571 = vpack.c.b16 %v560, %v559
    %v572 = vpack.c.b16 %v562, %v561
    %v573 = vpack.c.b16 %v564, %v563
    %v574 = vpack.c.b16 %v566, %v565
    %583 = vmatpush.bf16.msra.mxu0 %v574
    %584 = vmatpush.bf16.msra.mxu0 %v573
    %585 = vmatpush.bf16.msra.mxu0 %v572
    %586 = vmatpush.bf16.msra.mxu0 %v571
    %587 = vmatpush.bf16.msra.mxu0 %v570
    %588 = vmatpush.bf16.msra.mxu0 %v569
    %589 = vmatpush.bf16.msra.mxu0 %v568
    %590 = vmatpush.bf16.msra.mxu0 %v567
    %591 = vmatmul.bf16.gmra.mxu0 %v518
    %v592 = vpop.f32.mrf.mxu0
    %v593 = vadd.f32 %v255, %v592
    %v594 = vpop.f32.mrf.mxu0
    %v595 = vadd.f32 %v257, %v594
    %596 = vdwg.mxu0
    %v597 = vadd.f32 %v431, %v593
    %v598 = vadd.f32 %v432, %v595
    %v599 = vpack.c.bf16 %v598, %v597
    %s600 = scalar_lea.vmem [#allocation8], 64
    %v601 = vld [vmem:[%s600] sm:$0xf]
    %v602 = vld [vmem:[%s600 + $0x4] sm:$0xf]
    %v603 = vld [vmem:[%s600 + $0x8] sm:$0xf]
    %v604 = vld [vmem:[%s600 + $0xc] sm:$0xf]
    %v605 = vld [vmem:[%s600 + $0x10] sm:$0xf]
    %v606 = vld [vmem:[%s600 + $0x14] sm:$0xf]
    %v607 = vld [vmem:[%s600 + $0x18] sm:$0xf]
    %v608 = vld [vmem:[%s600 + $0x1c] sm:$0xf]
    %v609 = vld [vmem:[%s600 + $0x20] sm:$0xf]
    %v610 = vld [vmem:[%s600 + $0x24] sm:$0xf]
    %v611 = vld [vmem:[%s600 + $0x28] sm:$0xf]
    %v612 = vld [vmem:[%s600 + $0x2c] sm:$0xf]
    %v613 = vld [vmem:[%s600 + $0x30] sm:$0xf]
    %v614 = vld [vmem:[%s600 + $0x34] sm:$0xf]
    %v615 = vld [vmem:[%s600 + $0x38] sm:$0xf]
    %v616 = vld [vmem:[%s600 + $0x3c] sm:$0xf]
    %v633 = vunpack.c.l.b16 %v601
    %v634 = vunpack.c.l.b16 %v602
    %v635 = vunpack.c.l.b16 %v603
    %v636 = vunpack.c.l.b16 %v604
    %v637 = vunpack.c.l.b16 %v605
    %v638 = vunpack.c.l.b16 %v606
    %v639 = vunpack.c.l.b16 %v607
    %v640 = vunpack.c.l.b16 %v608
    %v641 = vunpack.c.l.b16 %v609
    %v642 = vunpack.c.l.b16 %v610
    %v643 = vunpack.c.l.b16 %v611
    %v644 = vunpack.c.l.b16 %v612
    %v645 = vunpack.c.l.b16 %v613
    %v646 = vunpack.c.l.b16 %v614
    %v647 = vunpack.c.l.b16 %v615
    %v648 = vunpack.c.l.b16 %v616
    %v649 = vpack.c.b16 %v634, %v633
    %v650 = vpack.c.b16 %v636, %v635
    %v651 = vpack.c.b16 %v638, %v637
    %v652 = vpack.c.b16 %v640, %v639
    %v653 = vpack.c.b16 %v642, %v641
    %v654 = vpack.c.b16 %v644, %v643
    %v655 = vpack.c.b16 %v646, %v645
    %v656 = vpack.c.b16 %v648, %v647
    %665 = vmatpush.bf16.msra.mxu0 %v656
    %666 = vmatpush.bf16.msra.mxu0 %v655
    %667 = vmatpush.bf16.msra.mxu0 %v654
    %668 = vmatpush.bf16.msra.mxu0 %v653
    %669 = vmatpush.bf16.msra.mxu0 %v652
    %670 = vmatpush.bf16.msra.mxu0 %v651
    %671 = vmatpush.bf16.msra.mxu0 %v650
    %672 = vmatpush.bf16.msra.mxu0 %v649
    %673 = vmatmul.bf16.gmra.mxu0 %v599
    %v674 = vpop.f32.mrf.mxu0
    %v675 = vadd.f32 %v269, %v674
    %v676 = vpop.f32.mrf.mxu0
    %v677 = vadd.f32 %v271, %v676
    %678 = vdwg.mxu0
    %vm679 = vcmp.gt.f32.partialorder %v675, 0.0
    %vm680 = vcmp.gt.f32.partialorder %v677, 0.0
    %v681 = vmul.f32 %v675, 0.2
    %v682 = vmul.f32 %v677, 0.2
    %v683 = vsel %vm679, %v675, %v681
    %v684 = vsel %vm680, %v677, %v682
    %v685 = vpack.c.bf16 %v684, %v683
    %s686 = scalar_lea.vmem [#allocation10], 64
    %v687 = vld [vmem:[%s686] sm:$0xf]
    %v688 = vld [vmem:[%s686 + $0x4] sm:$0xf]
    %v689 = vld [vmem:[%s686 + $0x8] sm:$0xf]
    %v690 = vld [vmem:[%s686 + $0xc] sm:$0xf]
    %v691 = vld [vmem:[%s686 + $0x10] sm:$0xf]
    %v692 = vld [vmem:[%s686 + $0x14] sm:$0xf]
    %v693 = vld [vmem:[%s686 + $0x18] sm:$0xf]
    %v694 = vld [vmem:[%s686 + $0x1c] sm:$0xf]
    %v695 = vld [vmem:[%s686 + $0x20] sm:$0xf]
    %v696 = vld [vmem:[%s686 + $0x24] sm:$0xf]
    %v697 = vld [vmem:[%s686 + $0x28] sm:$0xf]
    %v698 = vld [vmem:[%s686 + $0x2c] sm:$0xf]
    %v699 = vld [vmem:[%s686 + $0x30] sm:$0xf]
    %v700 = vld [vmem:[%s686 + $0x34] sm:$0xf]
    %v701 = vld [vmem:[%s686 + $0x38] sm:$0xf]
    %v702 = vld [vmem:[%s686 + $0x3c] sm:$0xf]
    %v719 = vunpack.c.l.b16 %v687
    %v720 = vunpack.c.l.b16 %v688
    %v721 = vunpack.c.l.b16 %v689
    %v722 = vunpack.c.l.b16 %v690
    %v723 = vunpack.c.l.b16 %v691
    %v724 = vunpack.c.l.b16 %v692
    %v725 = vunpack.c.l.b16 %v693
    %v726 = vunpack.c.l.b16 %v694
    %v727 = vunpack.c.l.b16 %v695
    %v728 = vunpack.c.l.b16 %v696
    %v729 = vunpack.c.l.b16 %v697
    %v730 = vunpack.c.l.b16 %v698
    %v731 = vunpack.c.l.b16 %v699
    %v732 = vunpack.c.l.b16 %v700
    %v733 = vunpack.c.l.b16 %v701
    %v734 = vunpack.c.l.b16 %v702
    %v735 = vpack.c.b16 %v720, %v719
    %v736 = vpack.c.b16 %v722, %v721
    %v737 = vpack.c.b16 %v724, %v723
    %v738 = vpack.c.b16 %v726, %v725
    %v739 = vpack.c.b16 %v728, %v727
    %v740 = vpack.c.b16 %v730, %v729
    %v741 = vpack.c.b16 %v732, %v731
    %v742 = vpack.c.b16 %v734, %v733
    %751 = vmatpush.bf16.msra.mxu0 %v742
    %752 = vmatpush.bf16.msra.mxu0 %v741
    %753 = vmatpush.bf16.msra.mxu0 %v740
    %754 = vmatpush.bf16.msra.mxu0 %v739
    %755 = vmatpush.bf16.msra.mxu0 %v738
    %756 = vmatpush.bf16.msra.mxu0 %v737
    %757 = vmatpush.bf16.msra.mxu0 %v736
    %758 = vmatpush.bf16.msra.mxu0 %v735
    %759 = vmatmul.bf16.gmra.mxu0 %v685
    %v760 = vpop.f32.mrf.mxu0
    %v761 = vadd.f32 %v283, %v760
    %v762 = vpop.f32.mrf.mxu0
    %v763 = vadd.f32 %v285, %v762
    %764 = vdwg.mxu0
    %v765 = vadd.f32 %v597, %v761
    %v766 = vadd.f32 %v598, %v763
    %v767 = vpack.c.bf16 %v766, %v765
    %s768 = scalar_lea.vmem [#allocation8], 128
    %v769 = vld [vmem:[%s768] sm:$0xf]
    %v770 = vld [vmem:[%s768 + $0x4] sm:$0xf]
    %v771 = vld [vmem:[%s768 + $0x8] sm:$0xf]
    %v772 = vld [vmem:[%s768 + $0xc] sm:$0xf]
    %v773 = vld [vmem:[%s768 + $0x10] sm:$0xf]
    %v774 = vld [vmem:[%s768 + $0x14] sm:$0xf]
    %v775 = vld [vmem:[%s768 + $0x18] sm:$0xf]
    %v776 = vld [vmem:[%s768 + $0x1c] sm:$0xf]
    %v777 = vld [vmem:[%s768 + $0x20] sm:$0xf]
    %v778 = vld [vmem:[%s768 + $0x24] sm:$0xf]
    %v779 = vld [vmem:[%s768 + $0x28] sm:$0xf]
    %v780 = vld [vmem:[%s768 + $0x2c] sm:$0xf]
    %v781 = vld [vmem:[%s768 + $0x30] sm:$0xf]
    %v782 = vld [vmem:[%s768 + $0x34] sm:$0xf]
    %v783 = vld [vmem:[%s768 + $0x38] sm:$0xf]
    %v784 = vld [vmem:[%s768 + $0x3c] sm:$0xf]
    %v801 = vunpack.c.l.b16 %v769
    %v802 = vunpack.c.l.b16 %v770
    %v803 = vunpack.c.l.b16 %v771
    %v804 = vunpack.c.l.b16 %v772
    %v805 = vunpack.c.l.b16 %v773
    %v806 = vunpack.c.l.b16 %v774
    %v807 = vunpack.c.l.b16 %v775
    %v808 = vunpack.c.l.b16 %v776
    %v809 = vunpack.c.l.b16 %v777
    %v810 = vunpack.c.l.b16 %v778
    %v811 = vunpack.c.l.b16 %v779
    %v812 = vunpack.c.l.b16 %v780
    %v813 = vunpack.c.l.b16 %v781
    %v814 = vunpack.c.l.b16 %v782
    %v815 = vunpack.c.l.b16 %v783
    %v816 = vunpack.c.l.b16 %v784
    %v817 = vpack.c.b16 %v802, %v801
    %v818 = vpack.c.b16 %v804, %v803
    %v819 = vpack.c.b16 %v806, %v805
    %v820 = vpack.c.b16 %v808, %v807
    %v821 = vpack.c.b16 %v810, %v809
    %v822 = vpack.c.b16 %v812, %v811
    %v823 = vpack.c.b16 %v814, %v813
    %v824 = vpack.c.b16 %v816, %v815
    %833 = vmatpush.bf16.msra.mxu0 %v824
    %834 = vmatpush.bf16.msra.mxu0 %v823
    %835 = vmatpush.bf16.msra.mxu0 %v822
    %836 = vmatpush.bf16.msra.mxu0 %v821
    %837 = vmatpush.bf16.msra.mxu0 %v820
    %838 = vmatpush.bf16.msra.mxu0 %v819
    %839 = vmatpush.bf16.msra.mxu0 %v818
    %840 = vmatpush.bf16.msra.mxu0 %v817
    %841 = vmatmul.bf16.gmra.mxu0 %v767
    %v842 = vpop.f32.mrf.mxu0
    %v843 = vadd.f32 %v297, %v842
    %v844 = vpop.f32.mrf.mxu0
    %v845 = vadd.f32 %v299, %v844
    %846 = vdwg.mxu0
    %vm847 = vcmp.gt.f32.partialorder %v843, 0.0
    %vm848 = vcmp.gt.f32.partialorder %v845, 0.0
    %v849 = vmul.f32 %v843, 0.2
    %v850 = vmul.f32 %v845, 0.2
    %v851 = vsel %vm847, %v843, %v849
    %v852 = vsel %vm848, %v845, %v850
    %v853 = vpack.c.bf16 %v852, %v851
    %s854 = scalar_lea.vmem [#allocation10], 128
    %v855 = vld [vmem:[%s854] sm:$0xf]
    %v856 = vld [vmem:[%s854 + $0x4] sm:$0xf]
    %v857 = vld [vmem:[%s854 + $0x8] sm:$0xf]
    %v858 = vld [vmem:[%s854 + $0xc] sm:$0xf]
    %v859 = vld [vmem:[%s854 + $0x10] sm:$0xf]
    %v860 = vld [vmem:[%s854 + $0x14] sm:$0xf]
    %v861 = vld [vmem:[%s854 + $0x18] sm:$0xf]
    %v862 = vld [vmem:[%s854 + $0x1c] sm:$0xf]
    %v863 = vld [vmem:[%s854 + $0x20] sm:$0xf]
    %v864 = vld [vmem:[%s854 + $0x24] sm:$0xf]
    %v865 = vld [vmem:[%s854 + $0x28] sm:$0xf]
    %v866 = vld [vmem:[%s854 + $0x2c] sm:$0xf]
    %v867 = vld [vmem:[%s854 + $0x30] sm:$0xf]
    %v868 = vld [vmem:[%s854 + $0x34] sm:$0xf]
    %v869 = vld [vmem:[%s854 + $0x38] sm:$0xf]
    %v870 = vld [vmem:[%s854 + $0x3c] sm:$0xf]
    %v887 = vunpack.c.l.b16 %v855
    %v888 = vunpack.c.l.b16 %v856
    %v889 = vunpack.c.l.b16 %v857
    %v890 = vunpack.c.l.b16 %v858
    %v891 = vunpack.c.l.b16 %v859
    %v892 = vunpack.c.l.b16 %v860
    %v893 = vunpack.c.l.b16 %v861
    %v894 = vunpack.c.l.b16 %v862
    %v895 = vunpack.c.l.b16 %v863
    %v896 = vunpack.c.l.b16 %v864
    %v897 = vunpack.c.l.b16 %v865
    %v898 = vunpack.c.l.b16 %v866
    %v899 = vunpack.c.l.b16 %v867
    %v900 = vunpack.c.l.b16 %v868
    %v901 = vunpack.c.l.b16 %v869
    %v902 = vunpack.c.l.b16 %v870
    %v903 = vpack.c.b16 %v888, %v887
    %v904 = vpack.c.b16 %v890, %v889
    %v905 = vpack.c.b16 %v892, %v891
    %v906 = vpack.c.b16 %v894, %v893
    %v907 = vpack.c.b16 %v896, %v895
    %v908 = vpack.c.b16 %v898, %v897
    %v909 = vpack.c.b16 %v900, %v899
    %v910 = vpack.c.b16 %v902, %v901
    %919 = vmatpush.bf16.msra.mxu0 %v910
    %920 = vmatpush.bf16.msra.mxu0 %v909
    %921 = vmatpush.bf16.msra.mxu0 %v908
    %922 = vmatpush.bf16.msra.mxu0 %v907
    %923 = vmatpush.bf16.msra.mxu0 %v906
    %924 = vmatpush.bf16.msra.mxu0 %v905
    %925 = vmatpush.bf16.msra.mxu0 %v904
    %926 = vmatpush.bf16.msra.mxu0 %v903
    %927 = vmatmul.bf16.gmra.mxu0 %v853
    %v928 = vpop.f32.mrf.mxu0
    %v929 = vadd.f32 %v311, %v928
    %v930 = vpop.f32.mrf.mxu0
    %v931 = vadd.f32 %v313, %v930
    %932 = vdwg.mxu0
    %v933 = vadd.f32 %v765, %v929
    %v934 = vadd.f32 %v766, %v931
    %v935 = vpack.c.bf16 %v934, %v933
    %s936 = scalar_lea.vmem [#allocation8], 192
    %v937 = vld [vmem:[%s936] sm:$0xf]
    %v938 = vld [vmem:[%s936 + $0x4] sm:$0xf]
    %v939 = vld [vmem:[%s936 + $0x8] sm:$0xf]
    %v940 = vld [vmem:[%s936 + $0xc] sm:$0xf]
    %v941 = vld [vmem:[%s936 + $0x10] sm:$0xf]
    %v942 = vld [vmem:[%s936 + $0x14] sm:$0xf]
    %v943 = vld [vmem:[%s936 + $0x18] sm:$0xf]
    %v944 = vld [vmem:[%s936 + $0x1c] sm:$0xf]
    %v945 = vld [vmem:[%s936 + $0x20] sm:$0xf]
    %v946 = vld [vmem:[%s936 + $0x24] sm:$0xf]
    %v947 = vld [vmem:[%s936 + $0x28] sm:$0xf]
    %v948 = vld [vmem:[%s936 + $0x2c] sm:$0xf]
    %v949 = vld [vmem:[%s936 + $0x30] sm:$0xf]
    %v950 = vld [vmem:[%s936 + $0x34] sm:$0xf]
    %v951 = vld [vmem:[%s936 + $0x38] sm:$0xf]
    %v952 = vld [vmem:[%s936 + $0x3c] sm:$0xf]
    %v969 = vunpack.c.l.b16 %v937
    %v970 = vunpack.c.l.b16 %v938
    %v971 = vunpack.c.l.b16 %v939
    %v972 = vunpack.c.l.b16 %v940
    %v973 = vunpack.c.l.b16 %v941
    %v974 = vunpack.c.l.b16 %v942
    %v975 = vunpack.c.l.b16 %v943
    %v976 = vunpack.c.l.b16 %v944
    %v977 = vunpack.c.l.b16 %v945
    %v978 = vunpack.c.l.b16 %v946
    %v979 = vunpack.c.l.b16 %v947
    %v980 = vunpack.c.l.b16 %v948
    %v981 = vunpack.c.l.b16 %v949
    %v982 = vunpack.c.l.b16 %v950
    %v983 = vunpack.c.l.b16 %v951
    %v984 = vunpack.c.l.b16 %v952
    %v985 = vpack.c.b16 %v970, %v969
    %v986 = vpack.c.b16 %v972, %v971
    %v987 = vpack.c.b16 %v974, %v973
    %v988 = vpack.c.b16 %v976, %v975
    %v989 = vpack.c.b16 %v978, %v977
    %v990 = vpack.c.b16 %v980, %v979
    %v991 = vpack.c.b16 %v982, %v981
    %v992 = vpack.c.b16 %v984, %v983
    %1001 = vmatpush.bf16.msra.mxu0 %v992
    %1002 = vmatpush.bf16.msra.mxu0 %v991
    %1003 = vmatpush.bf16.msra.mxu0 %v990
    %1004 = vmatpush.bf16.msra.mxu0 %v989
    %1005 = vmatpush.bf16.msra.mxu0 %v988
    %1006 = vmatpush.bf16.msra.mxu0 %v987
    %1007 = vmatpush.bf16.msra.mxu0 %v986
    %1008 = vmatpush.bf16.msra.mxu0 %v985
    %1009 = vmatmul.bf16.gmra.mxu0 %v935
    %v1010 = vpop.f32.mrf.mxu0
    %v1011 = vadd.f32 %v325, %v1010
    %v1012 = vpop.f32.mrf.mxu0
    %v1013 = vadd.f32 %v327, %v1012
    %1014 = vdwg.mxu0
    %vm1015 = vcmp.gt.f32.partialorder %v1011, 0.0
    %vm1016 = vcmp.gt.f32.partialorder %v1013, 0.0
    %v1017 = vmul.f32 %v1011, 0.2
    %v1018 = vmul.f32 %v1013, 0.2
    %v1019 = vsel %vm1015, %v1011, %v1017
    %v1020 = vsel %vm1016, %v1013, %v1018
    %v1021 = vpack.c.bf16 %v1020, %v1019
    %s1022 = scalar_lea.vmem [#allocation10], 192
    %v1023 = vld [vmem:[%s1022] sm:$0xf]
    %v1024 = vld [vmem:[%s1022 + $0x4] sm:$0xf]
    %v1025 = vld [vmem:[%s1022 + $0x8] sm:$0xf]
    %v1026 = vld [vmem:[%s1022 + $0xc] sm:$0xf]
    %v1027 = vld [vmem:[%s1022 + $0x10] sm:$0xf]
    %v1028 = vld [vmem:[%s1022 + $0x14] sm:$0xf]
    %v1029 = vld [vmem:[%s1022 + $0x18] sm:$0xf]
    %v1030 = vld [vmem:[%s1022 + $0x1c] sm:$0xf]
    %v1031 = vld [vmem:[%s1022 + $0x20] sm:$0xf]
    %v1032 = vld [vmem:[%s1022 + $0x24] sm:$0xf]
    %v1033 = vld [vmem:[%s1022 + $0x28] sm:$0xf]
    %v1034 = vld [vmem:[%s1022 + $0x2c] sm:$0xf]
    %v1035 = vld [vmem:[%s1022 + $0x30] sm:$0xf]
    %v1036 = vld [vmem:[%s1022 + $0x34] sm:$0xf]
    %v1037 = vld [vmem:[%s1022 + $0x38] sm:$0xf]
    %v1038 = vld [vmem:[%s1022 + $0x3c] sm:$0xf]
    %v1055 = vunpack.c.l.b16 %v1023
    %v1056 = vunpack.c.l.b16 %v1024
    %v1057 = vunpack.c.l.b16 %v1025
    %v1058 = vunpack.c.l.b16 %v1026
    %v1059 = vunpack.c.l.b16 %v1027
    %v1060 = vunpack.c.l.b16 %v1028
    %v1061 = vunpack.c.l.b16 %v1029
    %v1062 = vunpack.c.l.b16 %v1030
    %v1063 = vunpack.c.l.b16 %v1031
    %v1064 = vunpack.c.l.b16 %v1032
    %v1065 = vunpack.c.l.b16 %v1033
    %v1066 = vunpack.c.l.b16 %v1034
    %v1067 = vunpack.c.l.b16 %v1035
    %v1068 = vunpack.c.l.b16 %v1036
    %v1069 = vunpack.c.l.b16 %v1037
    %v1070 = vunpack.c.l.b16 %v1038
    %v1071 = vpack.c.b16 %v1056, %v1055
    %v1072 = vpack.c.b16 %v1058, %v1057
    %v1073 = vpack.c.b16 %v1060, %v1059
    %v1074 = vpack.c.b16 %v1062, %v1061
    %v1075 = vpack.c.b16 %v1064, %v1063
    %v1076 = vpack.c.b16 %v1066, %v1065
    %v1077 = vpack.c.b16 %v1068, %v1067
    %v1078 = vpack.c.b16 %v1070, %v1069
    %1087 = vmatpush.bf16.msra.mxu0 %v1078
    %1088 = vmatpush.bf16.msra.mxu0 %v1077
    %1089 = vmatpush.bf16.msra.mxu0 %v1076
    %1090 = vmatpush.bf16.msra.mxu0 %v1075
    %1091 = vmatpush.bf16.msra.mxu0 %v1074
    %1092 = vmatpush.bf16.msra.mxu0 %v1073
    %1093 = vmatpush.bf16.msra.mxu0 %v1072
    %1094 = vmatpush.bf16.msra.mxu0 %v1071
    %1095 = vmatmul.bf16.gmra.mxu0 %v1021
    %v1096 = vpop.f32.mrf.mxu0
    %v1097 = vadd.f32 %v339, %v1096
    %v1098 = vpop.f32.mrf.mxu0
    %v1099 = vadd.f32 %v341, %v1098
    %1100 = vdwg.mxu0
    %v1101 = vadd.f32 %v933, %v1097
    %v1102 = vadd.f32 %v934, %v1099
    %v1103 = vpack.c.bf16 %v1102, %v1101
    %v1104 = vld [vmem:[#allocation11] sm:$0xf]
    %v1105 = vld [vmem:[#allocation11 + $0x4] sm:$0xf]
    %v1106 = vld [vmem:[#allocation11 + $0x8] sm:$0xf]
    %v1107 = vld [vmem:[#allocation11 + $0xc] sm:$0xf]
    %v1108 = vld [vmem:[#allocation11 + $0x10] sm:$0xf]
    %v1109 = vld [vmem:[#allocation11 + $0x14] sm:$0xf]
    %v1110 = vld [vmem:[#allocation11 + $0x18] sm:$0xf]
    %v1111 = vld [vmem:[#allocation11 + $0x1c] sm:$0xf]
    %v1112 = vld [vmem:[#allocation11 + $0x20] sm:$0xf]
    %v1113 = vld [vmem:[#allocation11 + $0x24] sm:$0xf]
    %v1114 = vld [vmem:[#allocation11 + $0x28] sm:$0xf]
    %v1115 = vld [vmem:[#allocation11 + $0x2c] sm:$0xf]
    %v1116 = vld [vmem:[#allocation11 + $0x30] sm:$0xf]
    %v1117 = vld [vmem:[#allocation11 + $0x34] sm:$0xf]
    %v1118 = vld [vmem:[#allocation11 + $0x38] sm:$0xf]
    %v1119 = vld [vmem:[#allocation11 + $0x3c] sm:$0xf]
    %v1120 = vld [vmem:[%s8] sm:$0x1]
    %v1122 = vperm.slane %v1120, 0
    %v1140 = vunpack.c.l.b16 %v1104
    %v1141 = vunpack.c.l.b16 %v1105
    %v1142 = vunpack.c.l.b16 %v1106
    %v1143 = vunpack.c.l.b16 %v1107
    %v1144 = vunpack.c.l.b16 %v1108
    %v1145 = vunpack.c.l.b16 %v1109
    %v1146 = vunpack.c.l.b16 %v1110
    %v1147 = vunpack.c.l.b16 %v1111
    %v1148 = vunpack.c.l.b16 %v1112
    %v1149 = vunpack.c.l.b16 %v1113
    %v1150 = vunpack.c.l.b16 %v1114
    %v1151 = vunpack.c.l.b16 %v1115
    %v1152 = vunpack.c.l.b16 %v1116
    %v1153 = vunpack.c.l.b16 %v1117
    %v1154 = vunpack.c.l.b16 %v1118
    %v1155 = vunpack.c.l.b16 %v1119
    %v1156 = vpack.c.b16 %v1141, %v1140
    %v1157 = vpack.c.b16 %v1143, %v1142
    %v1158 = vpack.c.b16 %v1145, %v1144
    %v1159 = vpack.c.b16 %v1147, %v1146
    %v1160 = vpack.c.b16 %v1149, %v1148
    %v1161 = vpack.c.b16 %v1151, %v1150
    %v1162 = vpack.c.b16 %v1153, %v1152
    %v1163 = vpack.c.b16 %v1155, %v1154
    %1172 = vmatpush.bf16.msra.mxu0 %v1163
    %1173 = vmatpush.bf16.msra.mxu0 %v1162
    %1174 = vmatpush.bf16.msra.mxu0 %v1161
    %1175 = vmatpush.bf16.msra.mxu0 %v1160
    %1176 = vmatpush.bf16.msra.mxu0 %v1159
    %1177 = vmatpush.bf16.msra.mxu0 %v1158
    %1178 = vmatpush.bf16.msra.mxu0 %v1157
    %1179 = vmatpush.bf16.msra.mxu0 %v1156
    %1180 = vmatmul.bf16.gmra.mxu0 %v1103
    %v1181 = vpop.f32.mrf.mxu0
    %v1182 = vadd.f32 %v1122, %v1181
    %v1183 = vpop.f32.mrf.mxu0
    %v1184 = vadd.f32 %v1122, %v1183
    %1185 = vdwg.mxu0
    %1186 = vst [vmem:[#allocation13] sm:$0xff] %v1182
    %1187 = vst [vmem:[#allocation13 + $0x8] sm:$0xff] %v1184
    // Predicated region
    $region62: #{tpu_custom_call.1} parent=1 // pred_check
      _
    $region63: #{tpu_custom_call.1} parent=1 // pred_check_branch
      %1189 = sbr.rel (0) target = $region65
    $region64: #{tpu_custom_call.1} parent=1 // pred_region
      %1191 = vsyncadd [#allocation4], 0
      %s1192 = sshll.u32 [#allocation13], 4
      %s1193 = int_to_ptr.vmem [resolvable:$true] %s1192
      %s1194 = sshll.u32 %s9, 4
      %s1195 = int_to_ptr.hbm [resolvable:$true] %s1194
      %1200 = dma.vmem_to_hbm [thread:$0]  %s1193, 256, %s1195, [#allocation4], 128, 128, 8
    $region65: #{tpu_custom_call.1} parent=1 // pred_fallthru
      _
    // Predicated region
    $region66: #{tpu_custom_call.1} parent=1 // pred_check
      _
    $region67: #{tpu_custom_call.1} parent=1 // pred_check_branch
      %1202 = sbr.rel (0) target = $region69
    $region68: #{tpu_custom_call.1} parent=1 // pred_region
      %1204 = dma.done [#allocation4], 256
    $region69: #{tpu_custom_call.1} parent=1 // pred_fallthru
      _
    %1205 = vsyncpa [#allocation3], 1
    %1206 = vsyncpa [#allocation6], 1
    %1207 = vsyncpa [#allocation9], 1
    %1208 = vsyncpa [#allocation12], 1
    %1209 = vsyncpa [#allocation4], 1

</llo_original>
